<compile_context>
chip_gen: v6e
topology: v6e:2x2x1
jax: 0.10.0
libtpu: 0.0.40
codegen_flags: <defaults>
</compile_context>

<pallas_src>
import functools

import jax
import jax.numpy as jnp
from jax import lax
from jax.experimental import pallas as pl
from jax.experimental.pallas import tpu as pltpu

_NEG_INF = -1e30  # finite "-inf": avoids NaN from (-inf) - (-inf) in the online max


def _attention_kernel(starts_ref, ends_ref, hidproj_ref, enc_ref, wenc_ref,
                      v_ref, out_ref, m_ref, l_ref):
    p = pl.program_id(0)          # 0: accumulate per-tree stats, 1: normalize
    t = pl.program_id(1)          # node-tile index

    tile_n = enc_ref.shape[0]
    nb = starts_ref.shape[1]      # batch size (number of trees)

    # ---- shared per-tile compute: membership mask + scores ------------------
    row = lax.broadcasted_iota(jnp.int32, (tile_n, nb), 0) + t * tile_n
    mask = (row >= starts_ref[...]) & (row < ends_ref[...])      # [tile_n, B]

    # Gather each node's (pre-projected) decoder state via a 0/1 matmul.
    onehot = mask.astype(jnp.float32)
    rep_proj = jnp.dot(onehot, hidproj_ref[...],
                       preferred_element_type=jnp.float32)       # [tile_n, h_enc]
    pre = rep_proj + jnp.dot(enc_ref[...], wenc_ref[...],
                             preferred_element_type=jnp.float32)
    energy = jnp.tanh(pre)                                       # [tile_n, h_enc]
    # VPU multiply + lane reduction instead of a 1-column MXU matmul.
    scores = jnp.sum(energy * v_ref[...], axis=-1, keepdims=True)  # [tile_n, 1]

    # ---- pass 0: online per-tree max / sum-of-exp ---------------------------
    @pl.when((p == 0) & (t == 0))
    def _init():
        m_ref[...] = jnp.full_like(m_ref, _NEG_INF)
        l_ref[...] = jnp.zeros_like(l_ref)

    @pl.when(p == 0)
    def _accumulate():
        masked = jnp.where(mask, scores, _NEG_INF)               # [tile_n, B]
        tile_max = jnp.max(masked, axis=0, keepdims=True)        # [1, B]
        m_old = m_ref[...]
        m_new = jnp.maximum(m_old, tile_max)
        alpha = jnp.exp(m_old - m_new)                           # rescale old sums
        shifted = jnp.where(mask, scores - m_new, _NEG_INF)      # masked-out -> exp ~ 0
        l_ref[...] = alpha * l_ref[...] + jnp.sum(jnp.exp(shifted),
                                                  axis=0, keepdims=True)
        m_ref[...] = m_new
        out_ref[...] = scores    # defined placeholder; pass 1 overwrites this block

    # ---- pass 1: normalize ---------------------------------------------------
    @pl.when(p == 1)
    def _normalize():
        m = m_ref[...]                                           # [1, B]
        l = l_ref[...]                                           # [1, B]
        # Scatter each node's tree stats back to the node (exactly one column
        # of `mask` is set per real node; zero columns for padded rows).
        max_pn = jnp.sum(jnp.where(mask, m, 0.0), axis=1, keepdims=True)
        den_pn = jnp.sum(jnp.where(mask, l, 0.0), axis=1, keepdims=True)
        e = jnp.exp(scores - max_pn)
        valid = den_pn > 0.0
        out_ref[...] = jnp.where(valid, e / jnp.where(valid, den_pn, 1.0), 0.0)


def _round_up(x, m):
    return (x + m - 1) // m * m


@functools.partial(jax.jit, static_argnames=("tree_sizes",))
def luong_concat_attention(prev_hidden_states, encoder_output, tree_sizes,
                           weight, bias, v):
    """Pallas implementation of LuongConcatAttention.forward.

    prev_hidden_states: [B, h_dec]
    encoder_output:     [N, h_enc]  (N = sum(tree_sizes))
    tree_sizes:         static tuple of ints, length B
    weight:             [h_enc, h_dec + h_enc]   (nn.Linear weight, torch layout)
    bias:               [h_enc]                  (nn.Linear bias)
    v:                  [h_enc, 1]
    returns:            [N, 1] attention weights (per-tree softmax)
    """
    batch, h_dec = prev_hidden_states.shape
    n_nodes, h_enc = encoder_output.shape

    # Split the Linear weight along its input dim:
    #   cat([rep, enc], 1) @ W^T == rep @ W[:, :h_dec]^T + enc @ W[:, h_dec:]^T
    w_dec_t = weight[:, :h_dec].T                     # [h_dec, h_enc]
    w_enc_t = weight[:, h_dec:].T                     # [h_enc, h_enc]

    # Hoisted decoder projection (+ bias): [B, h_enc], computed once.
    hid_proj = prev_hidden_states @ w_dec_t + bias[None, :]

    # Tree membership as node-offset ranges (int32 [1, B]).
    sizes = jnp.asarray(tree_sizes, dtype=jnp.int32)
    ends = jnp.cumsum(sizes)[None, :]
    starts = ends - sizes[None, :]

    # Tile the node axis (pad to a multiple of the tile).
    tile_n = min(512, _round_up(n_nodes, 8))
    n_pad = _round_up(n_nodes, tile_n)
    if n_pad != n_nodes:
        encoder_output = jnp.pad(encoder_output, ((0, n_pad - n_nodes), (0, 0)))
    num_tiles = n_pad // tile_n

    v_row = v.reshape(1, h_enc)

    out = pl.pallas_call(
        _attention_kernel,
        out_shape=jax.ShapeDtypeStruct((n_pad, 1), jnp.float32),
        grid_spec=pltpu.PrefetchScalarGridSpec(
            num_scalar_prefetch=0,
            grid=(2, num_tiles),                                   # (pass, node tile)
            in_specs=[
                pl.BlockSpec((1, batch), lambda p, t: (0, 0)),       # tree starts
                pl.BlockSpec((1, batch), lambda p, t: (0, 0)),       # tree ends
                pl.BlockSpec((batch, h_enc), lambda p, t: (0, 0)),   # hid_proj (resident)
                pl.BlockSpec((tile_n, h_enc), lambda p, t: (t, 0)),  # enc tile (streamed)
                pl.BlockSpec((h_enc, h_enc), lambda p, t: (0, 0)),   # W_enc^T (resident)
                pl.BlockSpec((1, h_enc), lambda p, t: (0, 0)),       # v row (resident)
            ],
            out_specs=pl.BlockSpec((tile_n, 1), lambda p, t: (t, 0)),
            scratch_shapes=[pltpu.VMEM((1, batch), jnp.float32),     # running per-tree max
                            pltpu.VMEM((1, batch), jnp.float32)],    # running per-tree sum
        ),
        compiler_params=pltpu.CompilerParams(
            # Both axes carry state (running [1,B] stats across node tiles;
            # pass 1 depends on pass 0) -> sequential execution.
            dimension_semantics=("arbitrary", "arbitrary"),
            vmem_limit_bytes=32 * 1024 * 1024,
        ),
    )(starts, ends, hid_proj, encoder_output, w_enc_t, v_row)

    return out[:n_nodes]


def _reference(prev_hidden_states, encoder_output, tree_sizes, weight, bias, v):
    """Pure-JAX mirror of the PyTorch forward."""
    h_dec = prev_hidden_states.shape[1]
    rep = jnp.concatenate(
        [jnp.broadcast_to(h[None, :], (t, h_dec))
         for h, t in zip(prev_hidden_states, tree_sizes)], axis=0)
    cat = jnp.concatenate([rep, encoder_output], axis=1)
    energy = jnp.tanh(cat @ weight.T + bias[None, :])
    scores = energy @ v
    outs, off = [], 0
    for t in tree_sizes:
        outs.append(jax.nn.softmax(scores[off:off + t], axis=0))
        off += t
    return jnp.concatenate(outs, axis=0)


def _run_case(key, tree_sizes, h_enc, h_dec, atol):
    batch = len(tree_sizes)
    n_nodes = sum(tree_sizes)
    k1, k2, k3, k4, k5 = jax.random.split(key, 5)

    prev_hidden_states = jax.random.normal(k1, (batch, h_dec), jnp.float32)
    encoder_output = jax.random.normal(k2, (n_nodes, h_enc), jnp.float32)

    # nn.Linear(h_dec + h_enc, h_enc): weight [h_enc, h_dec+h_enc], bias [h_enc].
    fan_in = h_dec + h_enc
    bound = 1.0 / (fan_in ** 0.5)
    weight = jax.random.uniform(k3, (h_enc, fan_in), jnp.float32, -bound, bound)
    bias = jax.random.uniform(k4, (h_enc,), jnp.float32, -bound, bound)
    v = jax.random.uniform(k5, (h_enc, 1), jnp.float32, 0.0, 1.0)   # torch.rand

    out = luong_concat_attention(prev_hidden_states, encoder_output,
                                 tuple(tree_sizes), weight, bias, v)
    out = jax.block_until_ready(out)

    ref = _reference(prev_hidden_states, encoder_output, tree_sizes,
                     weight, bias, v)
    assert out.shape == (n_nodes, 1), out.shape
    assert bool(jnp.allclose(out, ref, atol=atol, rtol=atol)), (out, ref)
    # Each tree's attention weights must sum to 1.
    off = 0
    for t_sz in tree_sizes:
        s = float(out[off:off + t_sz].sum())
        assert abs(s - 1.0) < 1e-4, s
        off += t_sz


if __name__ == "__main__":
    key = jax.random.PRNGKey(0)
    k_a, k_b = jax.random.split(key, 2)

    # Small case: single tile, no padding.
    _run_case(k_a, tree_sizes=(3, 5), h_enc=32, h_dec=32, atol=1e-5)
    # Larger case: exercises multi-tile streaming, node-padding and the
    # cross-tile online segment softmax (N=680 -> 2 tiles of 512 with padding).
    _run_case(k_b, tree_sizes=(257, 300, 123), h_enc=32, h_dec=32, atol=1e-5)

    print("KERNEL_OK")
</pallas_src>

<mosaic_0001>
module attributes {stable_mosaic.version = 11 : i64} {
  func.func @_attention_kernel(%arg0: i32, %arg1: i32, %arg2: memref<1x2xi32, #tpu.memory_space<vmem>>, %arg3: memref<1x2xi32, #tpu.memory_space<vmem>>, %arg4: memref<2x32xf32, #tpu.memory_space<vmem>>, %arg5: memref<8x32xf32, #tpu.memory_space<vmem>>, %arg6: memref<32x32xf32, #tpu.memory_space<vmem>>, %arg7: memref<1x32xf32, #tpu.memory_space<vmem>>, %arg8: memref<8x1xf32, #tpu.memory_space<vmem>>, %arg9: memref<1x2xf32, #tpu.memory_space<vmem>>, %arg10: memref<1x2xf32, #tpu.memory_space<vmem>>) attributes {dimension_semantics = [#tpu.dimension_semantics<arbitrary>, #tpu.dimension_semantics<arbitrary>], iteration_bounds = array<i64: 2, 1>, scalar_prefetch = 0 : i64, scratch_operands = 2 : i64, tpu.core_type = #tpu.core_type<tc>, window_params = [{pipeline_mode = #tpu.pipeline_mode<synchronous>, transform_indices = @transform_0, window_bounds = array<i64: 1, 2>}, {pipeline_mode = #tpu.pipeline_mode<synchronous>, transform_indices = @transform_1, window_bounds = array<i64: 1, 2>}, {pipeline_mode = #tpu.pipeline_mode<synchronous>, transform_indices = @transform_2, window_bounds = array<i64: 2, 32>}, {transform_indices = @transform_3, window_bounds = array<i64: 8, 32>}, {pipeline_mode = #tpu.pipeline_mode<synchronous>, transform_indices = @transform_4, window_bounds = array<i64: 32, 32>}, {pipeline_mode = #tpu.pipeline_mode<synchronous>, transform_indices = @transform_5, window_bounds = array<i64: 1, 32>}, {transform_indices = @transform_6, window_bounds = array<i64: 8, 1>}]} {
    %0 = tpu.iota {dimensions = array<i32: 0>} : vector<8x2xi32>
    %c8_i32 = arith.constant 8 : i32
    %1 = arith.muli %arg1, %c8_i32 : i32
    %2 = vector.broadcast %1 : i32 to vector<8x2xi32>
    %3 = arith.addi %0, %2 : vector<8x2xi32>
    %c0 = arith.constant 0 : index
    %c0_0 = arith.constant 0 : index
    %4 = vector.load %arg2[%c0, %c0_0] : memref<1x2xi32, #tpu.memory_space<vmem>>, vector<1x2xi32>
    %5 = vector.broadcast %4 : vector<1x2xi32> to vector<8x2xi32>
    %6 = arith.cmpi sge, %3, %5 : vector<8x2xi32>
    %c0_1 = arith.constant 0 : index
    %c0_2 = arith.constant 0 : index
    %7 = vector.load %arg3[%c0_1, %c0_2] : memref<1x2xi32, #tpu.memory_space<vmem>>, vector<1x2xi32>
    %8 = vector.broadcast %7 : vector<1x2xi32> to vector<8x2xi32>
    %9 = arith.cmpi slt, %3, %8 : vector<8x2xi32>
    %10 = arith.andi %6, %9 : vector<8x2xi1>
    %11 = arith.extui %10 : vector<8x2xi1> to vector<8x2xi32>
    %12 = arith.sitofp %11 : vector<8x2xi32> to vector<8x2xf32>
    %c0_3 = arith.constant 0 : index
    %c0_4 = arith.constant 0 : index
    %13 = vector.load %arg4[%c0_3, %c0_4] : memref<2x32xf32, #tpu.memory_space<vmem>>, vector<2x32xf32>
    %cst = arith.constant dense<0.000000e+00> : vector<8x32xf32>
    %14 = tpu.matmul %12, %13, %cst {dimension_numbers = #tpu.dot_dimension_numbers<[1], [0], [0], [1], [0, 0, 1, 1], [], []>} : vector<8x2xf32>, vector<2x32xf32>, vector<8x32xf32> -> vector<8x32xf32>
    %c0_5 = arith.constant 0 : index
    %c0_6 = arith.constant 0 : index
    %15 = vector.load %arg5[%c0_5, %c0_6] : memref<8x32xf32, #tpu.memory_space<vmem>>, vector<8x32xf32>
    %c0_7 = arith.constant 0 : index
    %c0_8 = arith.constant 0 : index
    %16 = vector.load %arg6[%c0_7, %c0_8] : memref<32x32xf32, #tpu.memory_space<vmem>>, vector<32x32xf32>
    %cst_9 = arith.constant dense<0.000000e+00> : vector<8x32xf32>
    %17 = tpu.matmul %15, %16, %cst_9 {dimension_numbers = #tpu.dot_dimension_numbers<[1], [0], [0], [1], [0, 0, 1, 1], [], []>} : vector<8x32xf32>, vector<32x32xf32>, vector<8x32xf32> -> vector<8x32xf32>
    %18 = arith.addf %14, %17 : vector<8x32xf32>
    %19 = math.tanh %18 : vector<8x32xf32>
    %c0_10 = arith.constant 0 : index
    %c0_11 = arith.constant 0 : index
    %20 = vector.load %arg7[%c0_10, %c0_11] : memref<1x32xf32, #tpu.memory_space<vmem>>, vector<1x32xf32>
    %21 = vector.broadcast %20 : vector<1x32xf32> to vector<8x32xf32>
    %22 = arith.mulf %19, %21 : vector<8x32xf32>
    %cst_12 = arith.constant dense<0.000000e+00> : vector<8xf32>
    %23 = vector.multi_reduction <add>, %22, %cst_12 [1] : vector<8x32xf32> to vector<8xf32>
    %24 = vector.shape_cast %23 : vector<8xf32> to vector<8x1xf32>
    %c0_i32 = arith.constant 0 : i32
    %25 = arith.cmpi eq, %arg0, %c0_i32 : i32
    %c0_i32_13 = arith.constant 0 : i32
    %26 = arith.cmpi eq, %arg1, %c0_i32_13 : i32
    %27 = arith.andi %25, %26 : i1
    %28 = arith.extui %27 : i1 to i32
    %c0_i32_14 = arith.constant 0 : i32
    %29 = arith.cmpi ne, %28, %c0_i32_14 : i32
    scf.if %29 {
      %cst_18 = arith.constant -1.000000e+30 : f32
      %36 = vector.broadcast %cst_18 : f32 to vector<1x2xf32>
      %c0_19 = arith.constant 0 : index
      %c0_20 = arith.constant 0 : index
      %37 = vector.load %arg9[%c0_19, %c0_20] : memref<1x2xf32, #tpu.memory_space<vmem>>, vector<1x2xf32>
      tpu.vector_store %arg9[%c0_19, %c0_20], %36 {strides = array<i32>} : memref<1x2xf32, #tpu.memory_space<vmem>>, vector<1x2xf32>,
      %cst_21 = arith.constant 0.000000e+00 : f32
      %38 = vector.broadcast %cst_21 : f32 to vector<1x2xf32>
      %c0_22 = arith.constant 0 : index
      %c0_23 = arith.constant 0 : index
      %39 = vector.load %arg10[%c0_22, %c0_23] : memref<1x2xf32, #tpu.memory_space<vmem>>, vector<1x2xf32>
      tpu.vector_store %arg10[%c0_22, %c0_23], %38 {strides = array<i32>} : memref<1x2xf32, #tpu.memory_space<vmem>>, vector<1x2xf32>,
    } else {
    }
    %c0_i32_15 = arith.constant 0 : i32
    %30 = arith.cmpi eq, %arg0, %c0_i32_15 : i32
    %31 = arith.extui %30 : i1 to i32
    %c0_i32_16 = arith.constant 0 : i32
    %32 = arith.cmpi ne, %31, %c0_i32_16 : i32
    scf.if %32 {
      %cst_18 = arith.constant -1.000000e+30 : f32
      %36 = vector.shape_cast %24 : vector<8x1xf32> to vector<8x1xf32>
      %37 = vector.broadcast %36 : vector<8x1xf32> to vector<8x2xf32>
      %38 = vector.broadcast %cst_18 : f32 to vector<8x2xf32>
      %39 = arith.select %10, %37, %38 : vector<8x2xi1>, vector<8x2xf32>
      %cst_19 = arith.constant dense<0xFF800000> : vector<2xf32>
      %40 = vector.multi_reduction <maximumf>, %39, %cst_19 [0] : vector<8x2xf32> to vector<2xf32>
      %41 = vector.shape_cast %40 : vector<2xf32> to vector<1x2xf32>
      %c0_20 = arith.constant 0 : index
      %c0_21 = arith.constant 0 : index
      %42 = vector.load %arg9[%c0_20, %c0_21] : memref<1x2xf32, #tpu.memory_space<vmem>>, vector<1x2xf32>
      %43 = arith.maximumf %42, %41 : vector<1x2xf32>
      %44 = arith.subf %42, %43 : vector<1x2xf32>
      %45 = math.exp %44 : vector<1x2xf32>
      %46 = vector.broadcast %24 : vector<8x1xf32> to vector<8x2xf32>
      %47 = vector.broadcast %43 : vector<1x2xf32> to vector<8x2xf32>
      %48 = arith.subf %46, %47 : vector<8x2xf32>
      %cst_22 = arith.constant -1.000000e+30 : f32
      %49 = vector.broadcast %cst_22 : f32 to vector<8x2xf32>
      %50 = arith.select %10, %48, %49 : vector<8x2xi1>, vector<8x2xf32>
      %c0_23 = arith.constant 0 : index
      %c0_24 = arith.constant 0 : index
      %51 = vector.load %arg10[%c0_23, %c0_24] : memref<1x2xf32, #tpu.memory_space<vmem>>, vector<1x2xf32>
      %52 = arith.mulf %45, %51 : vector<1x2xf32>
      %53 = math.exp %50 : vector<8x2xf32>
      %cst_25 = arith.constant dense<0.000000e+00> : vector<2xf32>
      %54 = vector.multi_reduction <add>, %53, %cst_25 [0] : vector<8x2xf32> to vector<2xf32>
      %55 = vector.shape_cast %54 : vector<2xf32> to vector<1x2xf32>
      %56 = arith.addf %52, %55 : vector<1x2xf32>
      %c0_26 = arith.constant 0 : index
      %c0_27 = arith.constant 0 : index
      %57 = vector.load %arg10[%c0_26, %c0_27] : memref<1x2xf32, #tpu.memory_space<vmem>>, vector<1x2xf32>
      tpu.vector_store %arg10[%c0_26, %c0_27], %56 {strides = array<i32>} : memref<1x2xf32, #tpu.memory_space<vmem>>, vector<1x2xf32>,
      %c0_28 = arith.constant 0 : index
      %c0_29 = arith.constant 0 : index
      %58 = vector.load %arg9[%c0_28, %c0_29] : memref<1x2xf32, #tpu.memory_space<vmem>>, vector<1x2xf32>
      tpu.vector_store %arg9[%c0_28, %c0_29], %43 {strides = array<i32>} : memref<1x2xf32, #tpu.memory_space<vmem>>, vector<1x2xf32>,
      %c0_30 = arith.constant 0 : index
      %c0_31 = arith.constant 0 : index
      %59 = vector.load %arg8[%c0_30, %c0_31] : memref<8x1xf32, #tpu.memory_space<vmem>>, vector<8x1xf32>
      tpu.vector_store %arg8[%c0_30, %c0_31], %24 {strides = array<i32>} : memref<8x1xf32, #tpu.memory_space<vmem>>, vector<8x1xf32>,
    } else {
    }
    %c1_i32 = arith.constant 1 : i32
    %33 = arith.cmpi eq, %arg0, %c1_i32 : i32
    %34 = arith.extui %33 : i1 to i32
    %c0_i32_17 = arith.constant 0 : i32
    %35 = arith.cmpi ne, %34, %c0_i32_17 : i32
    scf.if %35 {
      %c0_18 = arith.constant 0 : index
      %c0_19 = arith.constant 0 : index
      %36 = vector.load %arg9[%c0_18, %c0_19] : memref<1x2xf32, #tpu.memory_space<vmem>>, vector<1x2xf32>
      %c0_20 = arith.constant 0 : index
      %c0_21 = arith.constant 0 : index
      %37 = vector.load %arg10[%c0_20, %c0_21] : memref<1x2xf32, #tpu.memory_space<vmem>>, vector<1x2xf32>
      %cst_22 = arith.constant 0.000000e+00 : f32
      %38 = vector.shape_cast %36 : vector<1x2xf32> to vector<1x2xf32>
      %39 = vector.broadcast %38 : vector<1x2xf32> to vector<8x2xf32>
      %40 = vector.broadcast %cst_22 : f32 to vector<8x2xf32>
      %41 = arith.select %10, %39, %40 : vector<8x2xi1>, vector<8x2xf32>
      %cst_23 = arith.constant dense<0.000000e+00> : vector<8xf32>
      %42 = vector.multi_reduction <add>, %41, %cst_23 [1] : vector<8x2xf32> to vector<8xf32>
      %43 = vector.shape_cast %42 : vector<8xf32> to vector<8x1xf32>
      %cst_24 = arith.constant 0.000000e+00 : f32
      %44 = vector.shape_cast %37 : vector<1x2xf32> to vector<1x2xf32>
      %45 = vector.broadcast %44 : vector<1x2xf32> to vector<8x2xf32>
      %46 = vector.broadcast %cst_24 : f32 to vector<8x2xf32>
      %47 = arith.select %10, %45, %46 : vector<8x2xi1>, vector<8x2xf32>
      %cst_25 = arith.constant dense<0.000000e+00> : vector<8xf32>
      %48 = vector.multi_reduction <add>, %47, %cst_25 [1] : vector<8x2xf32> to vector<8xf32>
      %49 = vector.shape_cast %48 : vector<8xf32> to vector<8x1xf32>
      %50 = arith.subf %24, %43 : vector<8x1xf32>
      %51 = math.exp %50 : vector<8x1xf32>
      %cst_26 = arith.constant 0.000000e+00 : f32
      %52 = vector.broadcast %cst_26 : f32 to vector<8x1xf32>
      %53 = arith.cmpf ogt, %49, %52 : vector<8x1xf32>
      %cst_27 = arith.constant 1.000000e+00 : f32
      %54 = vector.broadcast %cst_27 : f32 to vector<8x1xf32>
      %55 = arith.select %53, %49, %54 : vector<8x1xi1>, vector<8x1xf32>
      %56 = arith.divf %51, %55 : vector<8x1xf32>
      %cst_28 = arith.constant 0.000000e+00 : f32
      %57 = vector.broadcast %cst_28 : f32 to vector<8x1xf32>
      %58 = arith.select %53, %56, %57 : vector<8x1xi1>, vector<8x1xf32>
      %c0_29 = arith.constant 0 : index
      %c0_30 = arith.constant 0 : index
      %59 = vector.load %arg8[%c0_29, %c0_30] : memref<8x1xf32, #tpu.memory_space<vmem>>, vector<8x1xf32>
      tpu.vector_store %arg8[%c0_29, %c0_30], %58 {strides = array<i32>} : memref<8x1xf32, #tpu.memory_space<vmem>>, vector<8x1xf32>,
    } else {
    }
    return
  }
  func.func @transform_0(%arg0: i32, %arg1: i32) -> (i32, i32) {
    %c0_i32 = arith.constant 0 : i32
    %c0_i32_0 = arith.constant 0 : i32
    %c0_i32_1 = arith.constant 0 : i32
    return %c0_i32, %c0_i32_0 : i32, i32
  }
  func.func @transform_1(%arg0: i32, %arg1: i32) -> (i32, i32) {
    %c0_i32 = arith.constant 0 : i32
    %c0_i32_0 = arith.constant 0 : i32
    %c0_i32_1 = arith.constant 0 : i32
    return %c0_i32, %c0_i32_0 : i32, i32
  }
  func.func @transform_2(%arg0: i32, %arg1: i32) -> (i32, i32) {
    %c0_i32 = arith.constant 0 : i32
    %c0_i32_0 = arith.constant 0 : i32
    %c0_i32_1 = arith.constant 0 : i32
    return %c0_i32, %c0_i32_0 : i32, i32
  }
  func.func @transform_3(%arg0: i32, %arg1: i32) -> (i32, i32) {
    %c0_i32 = arith.constant 0 : i32
    %c0_i32_0 = arith.constant 0 : i32
    return %arg1, %c0_i32 : i32, i32
  }
  func.func @transform_4(%arg0: i32, %arg1: i32) -> (i32, i32) {
    %c0_i32 = arith.constant 0 : i32
    %c0_i32_0 = arith.constant 0 : i32
    %c0_i32_1 = arith.constant 0 : i32
    return %c0_i32, %c0_i32_0 : i32, i32
  }
  func.func @transform_5(%arg0: i32, %arg1: i32) -> (i32, i32) {
    %c0_i32 = arith.constant 0 : i32
    %c0_i32_0 = arith.constant 0 : i32
    %c0_i32_1 = arith.constant 0 : i32
    return %c0_i32, %c0_i32_0 : i32, i32
  }
  func.func @transform_6(%arg0: i32, %arg1: i32) -> (i32, i32) {
    %c0_i32 = arith.constant 0 : i32
    %c0_i32_0 = arith.constant 0 : i32
    return %arg1, %c0_i32 : i32, i32
  }
}

</mosaic_0001>

<llo_original>
// kernel: luong_concat_attention.1
$region0: #{luong_concat_attention.1}
  #allocation0 [shape = 'u32[]', space=smem, size = 0x4, offset = 0x4, fixed_abs, tag = 'smem constant byte address 0x4 - core index']
  #allocation1 [shape = 'u32[144,128]{1,0:T(1,128)}', space=vmem, size = 0x12000, scoped, tag = 'internal scratch']
  #allocation2 [shape = 'f32[1,2]{1,0:T(1,128)}', space=vmem, size = 0x200, scoped, tag = 'scratch operand']
  #allocation3 [shape = 'f32[1,2]{1,0:T(1,128)}', space=vmem, size = 0x200, scoped, tag = 'scratch operand']
  %s0 = inlined_call_operand.vmem [shape: s32[1,2], index: 0, kind: input, shape index: {}]
  %s1 = inlined_call_operand.vmem [shape: s32[1,2], index: 1, kind: input, shape index: {}]
  %s2 = inlined_call_operand.vmem [shape: f32[2,32], index: 2, kind: input, shape index: {}]
  %s3 = inlined_call_operand.vmem [shape: f32[8,32], index: 3, kind: input, shape index: {}]
  %s4 = inlined_call_operand.vmem [shape: f32[32,32], index: 4, kind: input, shape index: {}]
  %s5 = inlined_call_operand.vmem [shape: f32[1,32], index: 5, kind: input, shape index: {}]
  %s6 = inlined_call_operand.vmem [shape: f32[8,1], index: 6, kind: output, shape index: {}]
  %s7 = sld [smem:[#allocation0]]
  $region69: #{luong_concat_attention.1} parent=0
    _
  %s9 = ssub.s32 1, %s7
  %s10 = scalar_select 0, %s9, %s7
  loop: start=0, step=1, limit=4
  $region2: #{luong_concat_attention.1} parent=0 // loop_pre_header
    _
  $region3: #{luong_concat_attention.1} parent=0 // loop_header
    %s12 = sphi 0, %s16
    %p13 = scmp.ge.s32.totalorder %s12, 4
    %s19 = sphi 0, %s31
    %s20 = sphi 0, %s27
    %s21 = sphi 0, %s19
    %s22 = sphi 0, %s20
    %s23 = sphi 0, %s21
    %s24 = sphi 0, %s22
    %s32 = sphi 0, %s32
    %s34 = sphi 0, %s32
    %s35 = sphi 0, %s34
    %s49 = sphi 0, %s35
    %s53 = sphi 0, %s53
    %s55 = sphi 0, %s53
    %s56 = sphi 0, %s55
    %s70 = sphi 0, %s56
    %s74 = sphi 0, %s74
    %s76 = sphi 0, %s74
    %s77 = sphi 0, %s76
    %s91 = sphi 0, %s77
    %s97 = sphi 0, %s99
    %s100 = sphi 0, %s97
    %s101 = sphi 0, %s100
    %s117 = sphi 0, %s101
    %s121 = sphi 0, %s121
    %s123 = sphi 0, %s121
    %s124 = sphi 0, %s123
    %s138 = sphi 0, %s124
    %s142 = sphi 0, %s142
    %s144 = sphi 0, %s142
    %s145 = sphi 0, %s144
    %s159 = sphi 0, %s145
    %s165 = sphi 0, %s167
    %s168 = sphi 0, %s165
    %s169 = sphi 0, %s168
    %s185 = sphi 0, %s169
  $region4: #{luong_concat_attention.1} parent=0 // loop_header_branch
    %15 = sbr.rel (%p13) target = $region8
  $region5: #{luong_concat_attention.1} parent=0 // loop_body
    %s17 = ssub.s32 %s12, 1
    %s18 = ssub.s32 %s12, 2
    %s25 = sadd.s32 1, %s20
    %p26 = scmp.ge.s32.totalorder %s25, 1
    %s27 = scalar_select %p26, 0, %s25
    %s28 = sadd.s32 1, %s19
    %s29 = scalar_select %p26, %s28, %s19
    %p30 = scmp.ge.s32.totalorder %s29, 2
    %s31 = scalar_select %p30, 0, %s29
    %s33 = sadd.s32 %s32, 1
    %p36 = scmp.eq.s32.totalorder %s12, 1
    %p37 = scmp.ne.s32.totalorder %s32, %s34
    %p38 = scmp.eq.s32.totalorder %s12, 0
    %p39 = por %p37, %p38
    %p40 = scmp.ne.s32.totalorder %s32, %s34
    %p41 = scmp.eq.s32.totalorder %s17, 1
    %p42 = por %p40, %p41
    %p43 = scmp.ne.s32.totalorder %s34, %s35
    %p44 = scmp.eq.s32.totalorder %s17, 0
    %p45 = por %p43, %p44
    %p46 = scmp.ne.s32.totalorder %s34, %s35
    %p47 = scmp.eq.s32.totalorder %s18, 1
    %p48 = por %p46, %p47
    %p50 = scmp.ne.s32.totalorder %s35, %s49
    %p51 = scmp.eq.s32.totalorder %s18, 0
    %p52 = por %p50, %p51
    %s54 = sadd.s32 %s53, 1
    %p57 = scmp.eq.s32.totalorder %s12, 1
    %p58 = scmp.ne.s32.totalorder %s53, %s55
    %p59 = scmp.eq.s32.totalorder %s12, 0
    %p60 = por %p58, %p59
    %p61 = scmp.ne.s32.totalorder %s53, %s55
    %p62 = scmp.eq.s32.totalorder %s17, 1
    %p63 = por %p61, %p62
    %p64 = scmp.ne.s32.totalorder %s55, %s56
    %p65 = scmp.eq.s32.totalorder %s17, 0
    %p66 = por %p64, %p65
    %p67 = scmp.ne.s32.totalorder %s55, %s56
    %p68 = scmp.eq.s32.totalorder %s18, 1
    %p69 = por %p67, %p68
    %p71 = scmp.ne.s32.totalorder %s56, %s70
    %p72 = scmp.eq.s32.totalorder %s18, 0
    %p73 = por %p71, %p72
    %s75 = sadd.s32 %s74, 1
    %p78 = scmp.eq.s32.totalorder %s12, 1
    %p79 = scmp.ne.s32.totalorder %s74, %s76
    %p80 = scmp.eq.s32.totalorder %s12, 0
    %p81 = por %p79, %p80
    %p82 = scmp.ne.s32.totalorder %s74, %s76
    %p83 = scmp.eq.s32.totalorder %s17, 1
    %p84 = por %p82, %p83
    %p85 = scmp.ne.s32.totalorder %s76, %s77
    %p86 = scmp.eq.s32.totalorder %s17, 0
    %p87 = por %p85, %p86
    %p88 = scmp.ne.s32.totalorder %s76, %s77
    %p89 = scmp.eq.s32.totalorder %s18, 1
    %p90 = por %p88, %p89
    %p92 = scmp.ne.s32.totalorder %s77, %s91
    %p93 = scmp.eq.s32.totalorder %s18, 0
    %p94 = por %p92, %p93
    %s95 = ssub.s32 %s20, %s27
    %p96 = scmp.eq.s32.totalorder %s95, 0
    %s98 = sadd.s32 %s97, 1
    %s99 = scalar_select %p96, %s97, %s98
    %p102 = pneg %p96
    %p103 = scmp.eq.s32.totalorder %s12, 1
    %p104 = por %p102, %p103
    %p105 = scmp.ne.s32.totalorder %s97, %s100
    %p106 = scmp.eq.s32.totalorder %s12, 0
    %p107 = por %p105, %p106
    %p108 = scmp.ne.s32.totalorder %s97, %s100
    %p109 = scmp.eq.s32.totalorder %s17, 1
    %p110 = por %p108, %p109
    %p111 = scmp.ne.s32.totalorder %s100, %s101
    %p112 = scmp.eq.s32.totalorder %s17, 0
    %p113 = por %p111, %p112
    %p114 = scmp.ne.s32.totalorder %s100, %s101
    %p115 = scmp.eq.s32.totalorder %s18, 1
    %p116 = por %p114, %p115
    %p118 = scmp.ne.s32.totalorder %s101, %s117
    %p119 = scmp.eq.s32.totalorder %s18, 0
    %p120 = por %p118, %p119
    %s122 = sadd.s32 %s121, 1
    %p125 = scmp.eq.s32.totalorder %s12, 1
    %p126 = scmp.ne.s32.totalorder %s121, %s123
    %p127 = scmp.eq.s32.totalorder %s12, 0
    %p128 = por %p126, %p127
    %p129 = scmp.ne.s32.totalorder %s121, %s123
    %p130 = scmp.eq.s32.totalorder %s17, 1
    %p131 = por %p129, %p130
    %p132 = scmp.ne.s32.totalorder %s123, %s124
    %p133 = scmp.eq.s32.totalorder %s17, 0
    %p134 = por %p132, %p133
    %p135 = scmp.ne.s32.totalorder %s123, %s124
    %p136 = scmp.eq.s32.totalorder %s18, 1
    %p137 = por %p135, %p136
    %p139 = scmp.ne.s32.totalorder %s124, %s138
    %p140 = scmp.eq.s32.totalorder %s18, 0
    %p141 = por %p139, %p140
    %s143 = sadd.s32 %s142, 1
    %p146 = scmp.eq.s32.totalorder %s12, 1
    %p147 = scmp.ne.s32.totalorder %s142, %s144
    %p148 = scmp.eq.s32.totalorder %s12, 0
    %p149 = por %p147, %p148
    %p150 = scmp.ne.s32.totalorder %s142, %s144
    %p151 = scmp.eq.s32.totalorder %s17, 1
    %p152 = por %p150, %p151
    %p153 = scmp.ne.s32.totalorder %s144, %s145
    %p154 = scmp.eq.s32.totalorder %s17, 0
    %p155 = por %p153, %p154
    %p156 = scmp.ne.s32.totalorder %s144, %s145
    %p157 = scmp.eq.s32.totalorder %s18, 1
    %p158 = por %p156, %p157
    %p160 = scmp.ne.s32.totalorder %s145, %s159
    %p161 = scmp.eq.s32.totalorder %s18, 0
    %p162 = por %p160, %p161
    %s163 = ssub.s32 %s20, %s27
    %p164 = scmp.eq.s32.totalorder %s163, 0
    %s166 = sadd.s32 %s165, 1
    %s167 = scalar_select %p164, %s165, %s166
    %p170 = pneg %p164
    %p171 = scmp.eq.s32.totalorder %s12, 1
    %p172 = por %p170, %p171
    %p173 = scmp.ne.s32.totalorder %s165, %s168
    %p174 = scmp.eq.s32.totalorder %s12, 0
    %p175 = por %p173, %p174
    %p176 = scmp.ne.s32.totalorder %s165, %s168
    %p177 = scmp.eq.s32.totalorder %s17, 1
    %p178 = por %p176, %p177
    %p179 = scmp.ne.s32.totalorder %s168, %s169
    %p180 = scmp.eq.s32.totalorder %s17, 0
    %p181 = por %p179, %p180
    %p182 = scmp.ne.s32.totalorder %s168, %s169
    %p183 = scmp.eq.s32.totalorder %s18, 1
    %p184 = por %p182, %p183
    %p186 = scmp.ne.s32.totalorder %s169, %s185
    %p187 = scmp.eq.s32.totalorder %s18, 0
    %p188 = por %p186, %p187
    %p189 = scmp.le.s32.totalorder 1, %s12
    %p190 = scmp.lt.s32.totalorder %s12, 3
    %p191 = pnand %p189, %p190
    %p192 = pneg %p191
    // Predicated region
    $region9: #{luong_concat_attention.1} parent=5 // pred_check
      _
    $region10: #{luong_concat_attention.1} parent=5 // pred_check_branch
      %194 = sbr.rel (%p191) target = $region12
    $region11: #{luong_concat_attention.1} parent=5 // pred_region
      %s195 = ssub.s32 %s12, 1
      // Predicated region
      $region13: #{luong_concat_attention.1} parent=11 // pred_check
        %p196 = pneg %p45
      $region14: #{luong_concat_attention.1} parent=11 // pred_check_branch
        %198 = sbr.rel (%p196) target = $region16
      $region15: #{luong_concat_attention.1} parent=11 // pred_region
        _
      $region16: #{luong_concat_attention.1} parent=11 // pred_fallthru
        _
      // Predicated region
      $region17: #{luong_concat_attention.1} parent=11 // pred_check
        %p199 = pneg %p66
      $region18: #{luong_concat_attention.1} parent=11 // pred_check_branch
        %201 = sbr.rel (%p199) target = $region20
      $region19: #{luong_concat_attention.1} parent=11 // pred_region
        _
      $region20: #{luong_concat_attention.1} parent=11 // pred_fallthru
        _
      // Predicated region
      $region21: #{luong_concat_attention.1} parent=11 // pred_check
        %p202 = pneg %p87
      $region22: #{luong_concat_attention.1} parent=11 // pred_check_branch
        %204 = sbr.rel (%p202) target = $region24
      $region23: #{luong_concat_attention.1} parent=11 // pred_region
        _
      $region24: #{luong_concat_attention.1} parent=11 // pred_fallthru
        _
      // Predicated region
      $region25: #{luong_concat_attention.1} parent=11 // pred_check
        %p205 = pneg %p113
      $region26: #{luong_concat_attention.1} parent=11 // pred_check_branch
        %207 = sbr.rel (%p205) target = $region28
      $region27: #{luong_concat_attention.1} parent=11 // pred_region
        %p208 = scmp.lt.s32.totalorder %s22, 0
        %s209 = scalar_select %p208, %s22, 0
        %s210 = smul.addr %s209, 8
        %s211 = scalar_lea.vmem %s3, %s210
      $region28: #{luong_concat_attention.1} parent=11 // pred_fallthru
        _
      // Predicated region
      $region29: #{luong_concat_attention.1} parent=11 // pred_check
        %p212 = pneg %p134
      $region30: #{luong_concat_attention.1} parent=11 // pred_check_branch
        %214 = sbr.rel (%p212) target = $region32
      $region31: #{luong_concat_attention.1} parent=11 // pred_region
        _
      $region32: #{luong_concat_attention.1} parent=11 // pred_fallthru
        _
      // Predicated region
      $region33: #{luong_concat_attention.1} parent=11 // pred_check
        %p215 = pneg %p155
      $region34: #{luong_concat_attention.1} parent=11 // pred_check_branch
        %217 = sbr.rel (%p215) target = $region36
      $region35: #{luong_concat_attention.1} parent=11 // pred_region
        _
      $region36: #{luong_concat_attention.1} parent=11 // pred_fallthru
        _
    $region12: #{luong_concat_attention.1} parent=5 // pred_fallthru
      _
    %p218 = scmp.lt.s32.totalorder %s12, 2
    // Predicated region
    $region37: #{luong_concat_attention.1} parent=5 // pred_check
      %p219 = pneg %p218
    $region38: #{luong_concat_attention.1} parent=5 // pred_check_branch
      %221 = sbr.rel (%p219) target = $region40
    $region39: #{luong_concat_attention.1} parent=5 // pred_region
      _
    $region40: #{luong_concat_attention.1} parent=5 // pred_fallthru
      _
    %p222 = scmp.le.s32.totalorder 1, %s12
    %p223 = scmp.lt.s32.totalorder %s12, 3
    %p224 = pnand %p222, %p223
    %p225 = pneg %p224
    // Predicated region
    $region41: #{luong_concat_attention.1} parent=5 // pred_check
      _
    $region42: #{luong_concat_attention.1} parent=5 // pred_check_branch
      %227 = sbr.rel (%p224) target = $region44
    $region43: #{luong_concat_attention.1} parent=5 // pred_region
      %s228 = ssub.s32 %s12, 1
      %p229 = pneg %p45
      %p230 = pneg %p42
      %p231 = pneg %p66
      %p232 = pneg %p63
      %p233 = pneg %p87
      %p234 = pneg %p84
      %p235 = scmp.lt.s32.totalorder %s22, 0
      %s236 = scalar_select %p235, %s22, 0
      %s237 = smul.addr %s236, 8
      %s238 = scalar_lea.vmem %s3, %s237
      %p239 = pneg %p113
      %p240 = pneg %p110
      %p241 = pneg %p134
      %p242 = pneg %p131
      %p243 = pneg %p155
      %p244 = pneg %p152
      %p245 = pneg %p181
      %p246 = pneg %p178
      %p247 = scmp.lt.s32.totalorder %s22, 0
      %s248 = scalar_select %p247, %s22, 0
      %s249 = smul.addr %s248, 8
      %s250 = scalar_lea.vmem %s6, %s249
      %p251 = scmp.lt.s32.totalorder %s22, 0
      %s252 = scalar_select %p251, %s22, 0
      %s253 = smul.addr %s252, 8
      %s254 = scalar_lea.vmem %s3, %s253
      %p255 = scmp.lt.s32.totalorder %s22, 0
      %s256 = scalar_select %p255, %s22, 0
      %s257 = smul.addr %s256, 8
      %s258 = scalar_lea.vmem %s6, %s257
      %v259 = vlaneseq
      %v260 = vshrl.u32 %v259, 7
      %s261 = smul.u32 %s22, 8
      %v262 = vstv %s261
      %v263 = vadd.s32 %v260, %v262
      %v264 = vld [vmem:[%s0] sm:$0x1]
      %v265 = vlaneseq
      %v266 = vshrl.u32 %v265, 7
      %v267 = vsub.s32 0, %v266
      %v268 = vrot.slane %v264, %v267
      %vm269 = vcmp.ge.s32.totalorder %v263, %v268
      %v270 = vld [vmem:[%s1] sm:$0x1]
      %v271 = vlaneseq
      %v272 = vshrl.u32 %v271, 7
      %v273 = vsub.s32 0, %v272
      %v274 = vrot.slane %v270, %v273
      %vm275 = vcmp.lt.s32.totalorder %v263, %v274
      %vm276 = vmand %vm269, %vm275
      %v277 = vsel %vm276, 1, 0
      %v278 = vcvt.s32.f32 %v277
      %v279 = vld [vmem:[%s2] sm:$0x3]
      %v280 = vld [vmem:[%s254] sm:$0xff]
      %v281 = vld [vmem:[%s4] sm:$0xff]
      %v282 = vld [vmem:[%s4 + $0x8] sm:$0xff]
      %v283 = vld [vmem:[%s4 + $0x10] sm:$0xff]
      %v284 = vld [vmem:[%s4 + $0x18] sm:$0xff]
      %vm285 = vcmask 261120
      %v287 = vsel %vm285, %v280, 0
      %289 = vmatprep.subr.mxu0 0.0
      %290 = vmatpush1.msra.mxu0 0.0
      %291 = vmatprep.subr.mxu0 0.0
      %292 = vmatpush1.msra.mxu0 0.0
      %293 = vmatprep.subr.mxu0 0.0
      %294 = vmatpush1.msra.mxu0 0.0
      %295 = vmatprep.subr.mxu0 0.0
      %296 = vmatpush1.msra.mxu0 0.0
      %297 = vmatprep.subr.mxu0 0.0
      %298 = vmatpush1.msra.mxu0 0.0
      %299 = vmatprep.subr.mxu0 0.0
      %300 = vmatpush1.msra.mxu0 0.0
      %301 = vmatprep.subr.mxu0 0.0
      %302 = vmatpush1.msra.mxu0 0.0
      %303 = vmatprep.subr.mxu0 0.0
      %304 = vmatpush1.msra.mxu0 0.0
      %305 = vmatprep.subr.mxu0 0.0
      %306 = vmatpush1.msra.mxu0 0.0
      %307 = vmatprep.subr.mxu0 0.0
      %308 = vmatpush1.msra.mxu0 0.0
      %309 = vmatprep.subr.mxu0 0.0
      %310 = vmatpush1.msra.mxu0 0.0
      %311 = vmatprep.subr.mxu0 0.0
      %312 = vmatpush1.msra.mxu0 0.0
      %313 = vmatprep.subr.mxu0 0.0
      %314 = vmatpush1.msra.mxu0 %v284
      %315 = vmatprep.subr.mxu0 0.0
      %316 = vmatpush1.msra.mxu0 %v283
      %317 = vmatprep.subr.mxu0 0.0
      %318 = vmatpush1.msra.mxu0 %v282
      %319 = vmatprep.subr.mxu0 0.0
      %320 = vmatpush1.msra.mxu0 %v281
      %321 = vmatprep.subr.mxu0 0.0
      %322 = vmatpush2.msra.mxu0 0.0
      %323 = vmatprep.subr.mxu0 0.0
      %324 = vmatpush2.msra.mxu0 0.0
      %325 = vmatprep.subr.mxu0 0.0
      %326 = vmatpush2.msra.mxu0 0.0
      %327 = vmatprep.subr.mxu0 0.0
      %328 = vmatpush2.msra.mxu0 0.0
      %329 = vmatprep.subr.mxu0 0.0
      %330 = vmatpush2.msra.mxu0 0.0
      %331 = vmatprep.subr.mxu0 0.0
      %332 = vmatpush2.msra.mxu0 0.0
      %333 = vmatprep.subr.mxu0 0.0
      %334 = vmatpush2.msra.mxu0 0.0
      %335 = vmatprep.subr.mxu0 0.0
      %336 = vmatpush2.msra.mxu0 0.0
      %337 = vmatprep.subr.mxu0 0.0
      %338 = vmatpush2.msra.mxu0 0.0
      %339 = vmatprep.subr.mxu0 0.0
      %340 = vmatpush2.msra.mxu0 0.0
      %341 = vmatprep.subr.mxu0 0.0
      %342 = vmatpush2.msra.mxu0 0.0
      %343 = vmatprep.subr.mxu0 0.0
      %344 = vmatpush2.msra.mxu0 0.0
      %345 = vmatprep.subr.mxu0 0.0
      %346 = vmatpush2.msra.mxu0 0.0
      %347 = vmatprep.subr.mxu0 0.0
      %348 = vmatpush2.msra.mxu0 0.0
      %349 = vmatprep.subr.mxu0 0.0
      %350 = vmatpush2.msra.mxu0 0.0
      %351 = vmatprep.subr.mxu0 0.0
      %352 = vmatpush2.msra.mxu0 0.0
      %353 = vmatprep.mubr.f32.mxu0 0.0
      %354 = vmatmul.mubr.f32.gmra.mxu0 %v287
      %v355 = vpop.f32.mrf.mxu0
      %v356 = vadd.f32 0.0, %v355
      %v357 = vpop.f32.mrf.mxu0
      %358 = vdwg.mxu0
      %vm359 = vcmask 15360
      %v361 = vsel %vm359, %v278, 0
      %vm363 = vcmask 1041408
      %v365 = vsel %vm363, %v279, 0
      %367 = vmatprep.subr.mxu0 0.0
      %368 = vmatpush1.msra.mxu0 0.0
      %369 = vmatprep.subr.mxu0 0.0
      %370 = vmatpush1.msra.mxu0 0.0
      %371 = vmatprep.subr.mxu0 0.0
      %372 = vmatpush1.msra.mxu0 0.0
      %373 = vmatprep.subr.mxu0 0.0
      %374 = vmatpush1.msra.mxu0 0.0
      %375 = vmatprep.subr.mxu0 0.0
      %376 = vmatpush1.msra.mxu0 0.0
      %377 = vmatprep.subr.mxu0 0.0
      %378 = vmatpush1.msra.mxu0 0.0
      %379 = vmatprep.subr.mxu0 0.0
      %380 = vmatpush1.msra.mxu0 0.0
      %381 = vmatprep.subr.mxu0 0.0
      %382 = vmatpush1.msra.mxu0 0.0
      %383 = vmatprep.subr.mxu0 0.0
      %384 = vmatpush1.msra.mxu0 0.0
      %385 = vmatprep.subr.mxu0 0.0
      %386 = vmatpush1.msra.mxu0 0.0
      %387 = vmatprep.subr.mxu0 0.0
      %388 = vmatpush1.msra.mxu0 0.0
      %389 = vmatprep.subr.mxu0 0.0
      %390 = vmatpush1.msra.mxu0 0.0
      %391 = vmatprep.subr.mxu0 0.0
      %392 = vmatpush1.msra.mxu0 0.0
      %393 = vmatprep.subr.mxu0 0.0
      %394 = vmatpush1.msra.mxu0 0.0
      %395 = vmatprep.subr.mxu0 0.0
      %396 = vmatpush1.msra.mxu0 0.0
      %397 = vmatprep.subr.mxu0 0.0
      %398 = vmatpush1.msra.mxu0 %v365
      %399 = vmatprep.subr.mxu0 0.0
      %400 = vmatpush2.msra.mxu0 0.0
      %401 = vmatprep.subr.mxu0 0.0
      %402 = vmatpush2.msra.mxu0 0.0
      %403 = vmatprep.subr.mxu0 0.0
      %404 = vmatpush2.msra.mxu0 0.0
      %405 = vmatprep.subr.mxu0 0.0
      %406 = vmatpush2.msra.mxu0 0.0
      %407 = vmatprep.subr.mxu0 0.0
      %408 = vmatpush2.msra.mxu0 0.0
      %409 = vmatprep.subr.mxu0 0.0
      %410 = vmatpush2.msra.mxu0 0.0
      %411 = vmatprep.subr.mxu0 0.0
      %412 = vmatpush2.msra.mxu0 0.0
      %413 = vmatprep.subr.mxu0 0.0
      %414 = vmatpush2.msra.mxu0 0.0
      %415 = vmatprep.subr.mxu0 0.0
      %416 = vmatpush2.msra.mxu0 0.0
      %417 = vmatprep.subr.mxu0 0.0
      %418 = vmatpush2.msra.mxu0 0.0
      %419 = vmatprep.subr.mxu0 0.0
      %420 = vmatpush2.msra.mxu0 0.0
      %421 = vmatprep.subr.mxu0 0.0
      %422 = vmatpush2.msra.mxu0 0.0
      %423 = vmatprep.subr.mxu0 0.0
      %424 = vmatpush2.msra.mxu0 0.0
      %425 = vmatprep.subr.mxu0 0.0
      %426 = vmatpush2.msra.mxu0 0.0
      %427 = vmatprep.subr.mxu0 0.0
      %428 = vmatpush2.msra.mxu0 0.0
      %429 = vmatprep.subr.mxu0 0.0
      %430 = vmatpush2.msra.mxu0 0.0
      %431 = vmatprep.mubr.f32.mxu0 0.0
      %432 = vmatmul.mubr.f32.gmra.mxu0 %v361
      %v433 = vpop.f32.mrf.mxu0
      %v434 = vadd.f32 %v356, %v433
      %v435 = vpop.f32.mrf.mxu0
      %436 = vdwg.mxu0
      %v437 = vtanh.pop %v434
      %v438 = vld [vmem:[%s5] sm:$0x1]
      %v440 = vlaneseq
      %v441 = vshrl.u32 %v440, 7
      %v442 = vsub.s32 0, %v441
      %v443 = vrot.slane %v438, %v442
      %v445 = vmul.f32 %v437, %v443
      %v446 = vsel %vm285, %v445, 0.0
      %447 = vadd.xlane.f32.xlu0 %v446
      %v448 = vpop.xlane.xlu0 %447
      %p449 = scmp.eq.s32.totalorder %s21, 0
      %p450 = scmp.eq.s32.totalorder %s22, 0
      %p451 = pnand %p449, %p450
      %p452 = pneg %p451
      // Predicated region
      $region45: #{luong_concat_attention.1} parent=43 // pred_check
        _
      $region46: #{luong_concat_attention.1} parent=43 // pred_check_branch
        %454 = sbr.rel (%p451) target = $region48
      $region47: #{luong_concat_attention.1} parent=43 // pred_region
        %vm455 = vcmask 8192
        %456 = vst.msk [vmem:[#allocation2] sm:$0x1] %vm455, -1e+30
        %457 = vst.msk [vmem:[#allocation3] sm:$0x1] %vm455, 0.0
      $region48: #{luong_concat_attention.1} parent=43 // pred_fallthru
        _
      // Predicated region
      $region49: #{luong_concat_attention.1} parent=43 // pred_check
        %p458 = pneg %p449
      $region50: #{luong_concat_attention.1} parent=43 // pred_check_branch
        %460 = sbr.rel (%p458) target = $region52
      $region51: #{luong_concat_attention.1} parent=43 // pred_region
        %v461 = vsel %vm276, %v448, -1e+30
        %v462 = vsel %vm359, %v461, -inf
        %v463 = vrot.slane %v462, 4
        %v464 = vmax.f32 %v462, %v463
        %v465 = vrot.slane %v464, 2
        %v466 = vmax.f32 %v464, %v465
        %v467 = vrot.slane %v466, 1
        %v468 = vmax.f32 %v466, %v467
        %v469 = vld [vmem:[#allocation2] sm:$0x1]
        %v470 = vmax.f32 %v469, %v468
        %v471 = vsub.f32 %v469, %v470
        %v472 = vmul.f32 %v471, 1.442695
        %v473 = vpow.pop %v472
        %v475 = vlaneseq
        %v476 = vshrl.u32 %v475, 7
        %v477 = vsub.s32 0, %v476
        %v478 = vrot.slane %v470, %v477
        %v480 = vsub.f32 %v448, %v478
        %v481 = vsel %vm276, %v480, -1e+30
        %v482 = vld [vmem:[#allocation3] sm:$0x1]
        %v483 = vmul.f32 %v473, %v482
        %v484 = vmul.f32 %v481, 1.442695
        %v485 = vpow.pop %v484
        %v486 = vsel %vm359, %v485, 0.0
        %v487 = vrot.slane %v486, 4
        %v488 = vadd.f32 %v486, %v487
        %v489 = vrot.slane %v488, 2
        %v490 = vadd.f32 %v488, %v489
        %v491 = vrot.slane %v490, 1
        %v492 = vadd.f32 %v490, %v491
        %v493 = vadd.f32 %v483, %v492
        %vm494 = vcmask 8192
        %495 = vst.msk [vmem:[#allocation3] sm:$0x1] %vm494, %v493
        %496 = vst.msk [vmem:[#allocation2] sm:$0x1] %vm494, %v470
        %vm497 = vcmask 7168
        %498 = vst.msk [vmem:[%s258] sm:$0xff] %vm497, %v448
      $region52: #{luong_concat_attention.1} parent=43 // pred_fallthru
        _
      %p499 = scmp.eq.s32.totalorder %s21, 1
      // Predicated region
      $region53: #{luong_concat_attention.1} parent=43 // pred_check
        %p500 = pneg %p499
      $region54: #{luong_concat_attention.1} parent=43 // pred_check_branch
        %502 = sbr.rel (%p500) target = $region56
      $region55: #{luong_concat_attention.1} parent=43 // pred_region
        %v503 = vld [vmem:[#allocation2] sm:$0x1]
        %v504 = vld [vmem:[#allocation3] sm:$0x1]
        %v506 = vlaneseq
        %v507 = vshrl.u32 %v506, 7
        %v508 = vsub.s32 0, %v507
        %v509 = vrot.slane %v503, %v508
        %v511 = vsel %vm276, %v509, 0.0
        %v512 = vsel %vm359, %v511, 0.0
        %513 = vadd.xlane.f32.xlu0 %v512
        %v514 = vpop.xlane.xlu0 %513
        %v516 = vlaneseq
        %v517 = vshrl.u32 %v516, 7
        %v518 = vsub.s32 0, %v517
        %v519 = vrot.slane %v504, %v518
        %v521 = vsel %vm276, %v519, 0.0
        %v522 = vsel %vm359, %v521, 0.0
        %523 = vadd.xlane.f32.xlu0 %v522
        %v524 = vpop.xlane.xlu0 %523
        %v525 = vsub.f32 %v448, %v514
        %v526 = vmul.f32 %v525, 1.442695
        %v527 = vpow.pop %v526
        %vm528 = vcmp.gt.f32.partialorder %v524, 0.0
        %v529 = vsel %vm528, %v524, 1.0
        %v530 = vrcp.pop %v529
        %v531 = vmul.f32 %v527, %v530
        %v532 = vsel %vm528, %v531, 0.0
        %vm533 = vcmask 7168
        %534 = vst.msk [vmem:[%s258] sm:$0xff] %vm533, %v532
      $region56: #{luong_concat_attention.1} parent=43 // pred_fallthru
        _
      %p535 = scmp.lt.s32.totalorder %s22, 0
      %s536 = scalar_select %p535, %s22, 0
      %s537 = smul.addr %s536, 8
      %s538 = scalar_lea.vmem %s6, %s537
      // Predicated region
      $region57: #{luong_concat_attention.1} parent=43 // pred_check
        %p539 = pneg %p178
      $region58: #{luong_concat_attention.1} parent=43 // pred_check_branch
        %541 = sbr.rel (%p539) target = $region60
      $region59: #{luong_concat_attention.1} parent=43 // pred_region
        _
      $region60: #{luong_concat_attention.1} parent=43 // pred_fallthru
        _
      // Predicated region
      $region61: #{luong_concat_attention.1} parent=43 // pred_check
        %p542 = pneg %p178
      $region62: #{luong_concat_attention.1} parent=43 // pred_check_branch
        %544 = sbr.rel (%p542) target = $region64
      $region63: #{luong_concat_attention.1} parent=43 // pred_region
        %p545 = scmp.lt.s32.totalorder %s22, 0
        %s546 = scalar_select %p545, %s22, 0
        %s547 = smul.addr %s546, 8
        %s548 = scalar_lea.vmem %s6, %s547
      $region64: #{luong_concat_attention.1} parent=43 // pred_fallthru
        _
    $region44: #{luong_concat_attention.1} parent=5 // pred_fallthru
      _
    %p549 = scmp.le.s32.totalorder 2, %s12
    // Predicated region
    $region65: #{luong_concat_attention.1} parent=5 // pred_check
      %p550 = pneg %p549
    $region66: #{luong_concat_attention.1} parent=5 // pred_check_branch
      %552 = sbr.rel (%p550) target = $region68
    $region67: #{luong_concat_attention.1} parent=5 // pred_region
      %s553 = ssub.s32 %s12, 2
    $region68: #{luong_concat_attention.1} parent=5 // pred_fallthru
      _
  $region6: #{luong_concat_attention.1} parent=0 // loop_footer
    %s16 = sadd.s32 1, %s12
  $region7: #{luong_concat_attention.1} parent=0 // loop_footer_branch
    %11 = sbr.rel target = $region3
  $region8: #{luong_concat_attention.1} parent=0 // loop_exit
    _

</llo_original>
